<compile_context>
chip_gen: v7x
topology: tpu7x:2x2x1
jax: 0.10.0
libtpu: 0.0.40
codegen_flags: <defaults>
</compile_context>

<pallas_src>
import functools
import math

import jax
import jax.numpy as jnp
from jax import lax
from jax.experimental import pallas as pl
from jax.experimental.pallas import tpu as pltpu

_SQRT_HALF = 1.0 / math.sqrt(2.0)
_TANH_C = math.sqrt(2.0 / math.pi)


def _gelu(x, approximate):
    if approximate:
        # tanh approximation — transcendental lands on the EUP slot (cheap).
        return 0.5 * x * (1.0 + jnp.tanh(_TANH_C * (x + 0.044715 * x * x * x)))
    # PyTorch nn.GELU() default (approximate='none'): 0.5*x*(1+erf(x/sqrt(2)))
    return 0.5 * x * (1.0 + lax.erf(x * _SQRT_HALF))


def _round_up(a, b):
    return ((a + b - 1) // b) * b


def _device_info():
    """Per-generation VMEM budget, detected from the local device kind."""
    kind = ""
    try:
        kind = jax.devices()[0].device_kind.lower()
    except Exception:
        pass
    if "v7" in kind:
        return {"gen": "v7x", "vmem_cap": 64 << 20}
    if "v6" in kind:
        return {"gen": "v6e", "vmem_cap": 128 << 20}
    if "v5" in kind:
        return {"gen": "v5e", "vmem_cap": 128 << 20}
    # Unknown generation: be conservative about VMEM.
    return {"gen": "unknown", "vmem_cap": 64 << 20}


# ---------------------------------------------------------------------------
# Kernel
# ---------------------------------------------------------------------------
def _fused_mlp_kernel(x_ref, w1_ref, b1_ref, w2_ref, b2_ref, w3_ref, b3_ref,
                      o_ref, acc_ref, *, approximate):
    h = pl.program_id(1)

    @pl.when(h == 0)
    def _init():
        acc_ref[...] = jnp.zeros_like(acc_ref)

    # Layer 1, current hidden-dim chunk: MXU matmul with f32 accumulation.
    z1 = jnp.dot(x_ref[...], w1_ref[...], preferred_element_type=jnp.float32)
    h1 = _gelu(z1 + b1_ref[...], approximate)          # f32 VPU/EUP math
    # Layer 2 partial sums over hidden-dim chunks into the f32 accumulator.
    acc_ref[...] += jnp.dot(h1.astype(w2_ref.dtype), w2_ref[...],
                            preferred_element_type=jnp.float32)

    @pl.when(h == pl.num_programs(1) - 1)
    def _finalize():
        h2 = _gelu(acc_ref[...] + b2_ref[...], approximate)
        y = jnp.dot(h2.astype(w3_ref.dtype), w3_ref[...],
                    preferred_element_type=jnp.float32) + b3_ref[...]
        o_ref[...] = y.astype(o_ref.dtype)


# ---------------------------------------------------------------------------
# Tile / VMEM sizing
# ---------------------------------------------------------------------------
def _estimate_vmem(tm, th, d_in, d_llm, cb, ob):
    return (2 * tm * d_in * cb            # x tile (double-buffered)
            + 2 * d_in * th * cb          # W1 column chunk
            + 2 * th * 4                  # b1 chunk (f32)
            + 2 * th * d_llm * cb         # W2 row chunk
            + 2 * d_llm * d_llm * cb      # W3 (constant index, 2 bufs alloc'd)
            + 2 * 2 * d_llm * 4           # b2, b3 (f32)
            + 2 * tm * d_llm * ob         # output tile
            + tm * d_llm * 4              # f32 accumulator scratch
            + tm * (th + d_llm) * 4)      # f32 temporaries (h1 / h2)


def _pick_tiles(m, d_in, d_h, d_llm, cb, ob, info, req_tm, req_th):
    m_aligned = _round_up(max(m, 1), 16)          # bf16-safe sublane multiple
    d_h_aligned = _round_up(max(d_h, 1), 128)

    if req_tm is None:
        req_tm = 512 if info["gen"] == "v7x" else 1024
    if req_th is None:
        req_th = 512 if info["gen"] == "v7x" else 1024

    tm = min(_round_up(req_tm, 16), m_aligned)
    th = min(_round_up(req_th, 128), d_h_aligned)

    budget = (info["vmem_cap"] * 5) // 8          # headroom for Mosaic scratch
    while _estimate_vmem(tm, th, d_in, d_llm, cb, ob) > budget and tm > 128:
        tm = min(max(128, _round_up(tm // 2, 16)), m_aligned)
    while _estimate_vmem(tm, th, d_in, d_llm, cb, ob) > budget and th > 128:
        th = max(128, _round_up(th // 2, 128))
    return tm, th


def _vmem_limit_bytes(tm, th, d_in, d_llm, cb, ob, info):
    est = _estimate_vmem(tm, th, d_in, d_llm, cb, ob)
    limit = int(est * 1.4) + (4 << 20)
    cap = info["vmem_cap"] - (4 << 20)
    return max(16 << 20, min(limit, cap))


# ---------------------------------------------------------------------------
# Wrapper
# ---------------------------------------------------------------------------
def fused_mlp_projector(x, params, *, tile_m=None, tile_h=None,
                        compute_dtype=jnp.bfloat16, approximate_gelu=False):
    """x: [..., fused_vision_dim] -> [..., llm_dim]."""
    w1, b1, w2, b2, w3, b3 = params
    d_in, d_h = w1.shape
    d_llm = w2.shape[1]
    assert x.shape[-1] == d_in
    out_dtype = x.dtype

    lead_shape = x.shape[:-1]
    m = math.prod(lead_shape) if lead_shape else 1
    x2d = x.reshape(m, d_in).astype(compute_dtype)

    cb = jnp.dtype(compute_dtype).itemsize
    ob = jnp.dtype(out_dtype).itemsize
    info = _device_info()

    tm, th = _pick_tiles(m, d_in, d_h, d_llm, cb, ob, info, tile_m, tile_h)
    m_pad = _round_up(m, tm)
    d_h_pad = _round_up(d_h, th)

    if m_pad != m:
        x2d = jnp.pad(x2d, ((0, m_pad - m), (0, 0)))

    # Matmul operands in compute_dtype (bf16 by default); biases stay f32.
    w1c = w1.astype(compute_dtype)
    w2c = w2.astype(compute_dtype)
    w3c = w3.astype(compute_dtype)
    b1c = b1.astype(jnp.float32)
    b2c = b2.astype(jnp.float32)
    b3c = b3.astype(jnp.float32)
    if d_h_pad != d_h:
        pad = d_h_pad - d_h
        w1c = jnp.pad(w1c, ((0, 0), (0, pad)))
        b1c = jnp.pad(b1c, ((0, 0), (0, pad)))
        w2c = jnp.pad(w2c, ((0, pad), (0, 0)))   # zero rows: padded units add 0

    n_m = m_pad // tm
    grid = (n_m, d_h_pad // th)

    # Honest HBM traffic: W1/W2/b1 are re-streamed once per M-tile; W3/b2/b3
    # have a constant block index and are fetched exactly once.
    cost = pl.CostEstimate(
        flops=2 * m_pad * (d_in * d_h_pad + d_h_pad * d_llm + d_llm * d_llm),
        transcendentals=m_pad * (d_h_pad + d_llm),
        bytes_accessed=(x2d.size * cb
                        + n_m * (w1c.size + w2c.size) * cb
                        + n_m * b1c.size * 4
                        + w3c.size * cb + (b2c.size + b3c.size) * 4
                        + m_pad * d_llm * ob),
    )

    kernel = functools.partial(_fused_mlp_kernel, approximate=approximate_gelu)

    out = pl.pallas_call(
        kernel,
        out_shape=jax.ShapeDtypeStruct((m_pad, d_llm), out_dtype),
        grid_spec=pltpu.PrefetchScalarGridSpec(
            num_scalar_prefetch=0,
            grid=grid,
            in_specs=[
                pl.BlockSpec((tm, d_in), lambda i, h: (i, 0)),     # x tile
                pl.BlockSpec((d_in, th), lambda i, h: (0, h)),     # W1 chunk
                pl.BlockSpec((1, th), lambda i, h: (0, h)),        # b1 chunk
                pl.BlockSpec((th, d_llm), lambda i, h: (h, 0)),    # W2 chunk
                pl.BlockSpec((1, d_llm), lambda i, h: (0, 0)),     # b2
                pl.BlockSpec((d_llm, d_llm), lambda i, h: (0, 0)),  # W3
                pl.BlockSpec((1, d_llm), lambda i, h: (0, 0)),     # b3
            ],
            out_specs=pl.BlockSpec((tm, d_llm), lambda i, h: (i, 0)),
            scratch_shapes=[pltpu.VMEM((tm, d_llm), jnp.float32)],
        ),
        compiler_params=pltpu.CompilerParams(
            dimension_semantics=("parallel", "arbitrary"),
            vmem_limit_bytes=_vmem_limit_bytes(tm, th, d_in, d_llm, cb, ob,
                                               info)),
        cost_estimate=cost,
    )(x2d, w1c, b1c, w2c, b2c, w3c, b3c)

    out = out[:m]
    return out.reshape(*lead_shape, d_llm)


# ---------------------------------------------------------------------------
# Params / reference / test
# ---------------------------------------------------------------------------
def init_fused_mlp_params(key, fused_vision_dim, llm_dim, dtype=jnp.float32):
    """PyTorch nn.Linear-style init; weights stored as (in_features, out_features)."""
    initial_projection_dim = fused_vision_dim * 4
    dims = [
        (fused_vision_dim, initial_projection_dim),
        (initial_projection_dim, llm_dim),
        (llm_dim, llm_dim),
    ]
    params = []
    keys = jax.random.split(key, 2 * len(dims))
    for li, (fan_in, fan_out) in enumerate(dims):
        bound = 1.0 / math.sqrt(fan_in)
        w = jax.random.uniform(keys[2 * li], (fan_in, fan_out), dtype,
                               minval=-bound, maxval=bound)
        b = jax.random.uniform(keys[2 * li + 1], (1, fan_out), dtype,
                               minval=-bound, maxval=bound)
        params.extend([w, b])
    return tuple(params)


def _reference_fused_mlp(x, params):
    """Pure-JAX f32 reference (same math as the PyTorch module)."""
    w1, b1, w2, b2, w3, b3 = params
    h = _gelu(x @ w1 + b1[0], approximate=False)
    h = _gelu(h @ w2 + b2[0], approximate=False)
    return h @ w3 + b3[0]


if __name__ == "__main__":
    # Small shapes consistent with the module's forward:
    #   fused_img_patches: [batch=2, num_patches=8, fused_vision_dim=32]
    #   llm_dim = 64  ->  output [2, 8, 64]
    batch, num_patches = 2, 8
    fused_vision_dim, llm_dim = 32, 64

    key = jax.random.PRNGKey(0)
    k_params, k_x = jax.random.split(key)

    params = init_fused_mlp_params(k_params, fused_vision_dim, llm_dim)
    x = jax.random.normal(k_x, (batch, num_patches, fused_vision_dim),
                          jnp.float32)

    y_ref = _reference_fused_mlp(x, params)

    # Exact-math path (f32 matmul operands) — tight tolerance vs reference.
    y32 = fused_mlp_projector(x, params, compute_dtype=jnp.float32)
    y32 = jax.block_until_ready(y32)
    assert y32.shape == (batch, num_patches, llm_dim)
    assert jnp.allclose(y32, y_ref, atol=1e-5, rtol=1e-5), "f32 path mismatch"

    # Default fast path (bf16 matmul operands, f32 accumulation) — loose tol.
    ybf = fused_mlp_projector(x, params)
    ybf = jax.block_until_ready(ybf)
    assert ybf.shape == (batch, num_patches, llm_dim)
    assert jnp.allclose(ybf, y_ref, atol=5e-2, rtol=5e-2), "bf16 path mismatch"

    print("KERNEL_OK")
</pallas_src>

<mosaic_0001>
module attributes {stable_mosaic.version = 11 : i64} {
  func.func @_fused_mlp_kernel(%arg0: i32, %arg1: i32, %arg2: memref<16x32xf32, #tpu.memory_space<vmem>>, %arg3: memref<32x128xf32, #tpu.memory_space<vmem>>, %arg4: memref<1x128xf32, #tpu.memory_space<vmem>>, %arg5: memref<128x64xf32, #tpu.memory_space<vmem>>, %arg6: memref<1x64xf32, #tpu.memory_space<vmem>>, %arg7: memref<64x64xf32, #tpu.memory_space<vmem>>, %arg8: memref<1x64xf32, #tpu.memory_space<vmem>>, %arg9: memref<16x64xf32, #tpu.memory_space<vmem>>, %arg10: memref<16x64xf32, #tpu.memory_space<vmem>>) attributes {dimension_semantics = [#tpu.dimension_semantics<parallel>, #tpu.dimension_semantics<arbitrary>], iteration_bounds = array<i64: 1, 1>, scalar_prefetch = 0 : i64, scratch_operands = 1 : i64, tpu.core_type = #tpu.core_type<tc>, window_params = [{transform_indices = @transform_0, window_bounds = array<i64: 16, 32>}, {transform_indices = @transform_1, window_bounds = array<i64: 32, 128>}, {transform_indices = @transform_2, window_bounds = array<i64: 1, 128>}, {transform_indices = @transform_3, window_bounds = array<i64: 128, 64>}, {pipeline_mode = #tpu.pipeline_mode<synchronous>, transform_indices = @transform_4, window_bounds = array<i64: 1, 64>}, {pipeline_mode = #tpu.pipeline_mode<synchronous>, transform_indices = @transform_5, window_bounds = array<i64: 64, 64>}, {pipeline_mode = #tpu.pipeline_mode<synchronous>, transform_indices = @transform_6, window_bounds = array<i64: 1, 64>}, {transform_indices = @transform_7, window_bounds = array<i64: 16, 64>}]} {
    %c0_i32 = arith.constant 0 : i32
    %0 = arith.cmpi eq, %arg1, %c0_i32 : i32
    %1 = arith.extui %0 : i1 to i32
    %c0_i32_0 = arith.constant 0 : i32
    %2 = arith.cmpi ne, %1, %c0_i32_0 : i32
    scf.if %2 {
      %cst_18 = arith.constant 0.000000e+00 : f32
      %25 = vector.broadcast %cst_18 : f32 to vector<16x64xf32>
      %c0_19 = arith.constant 0 : index
      %c0_20 = arith.constant 0 : index
      %26 = vector.load %arg10[%c0_19, %c0_20] : memref<16x64xf32, #tpu.memory_space<vmem>>, vector<16x64xf32>
      tpu.vector_store %arg10[%c0_19, %c0_20], %25 {strides = array<i32>} : memref<16x64xf32, #tpu.memory_space<vmem>>, vector<16x64xf32>,
    } else {
    }
    %c0 = arith.constant 0 : index
    %c0_1 = arith.constant 0 : index
    %3 = vector.load %arg2[%c0, %c0_1] : memref<16x32xf32, #tpu.memory_space<vmem>>, vector<16x32xf32>
    %c0_2 = arith.constant 0 : index
    %c0_3 = arith.constant 0 : index
    %4 = vector.load %arg3[%c0_2, %c0_3] : memref<32x128xf32, #tpu.memory_space<vmem>>, vector<32x128xf32>
    %cst = arith.constant dense<0.000000e+00> : vector<16x128xf32>
    %5 = tpu.matmul %3, %4, %cst {dimension_numbers = #tpu.dot_dimension_numbers<[1], [0], [0], [1], [0, 0, 1, 1], [], []>} : vector<16x32xf32>, vector<32x128xf32>, vector<16x128xf32> -> vector<16x128xf32>
    %c0_4 = arith.constant 0 : index
    %c0_5 = arith.constant 0 : index
    %6 = vector.load %arg4[%c0_4, %c0_5] : memref<1x128xf32, #tpu.memory_space<vmem>>, vector<1x128xf32>
    %7 = vector.broadcast %6 : vector<1x128xf32> to vector<16x128xf32>
    %8 = arith.addf %5, %7 : vector<16x128xf32>
    %cst_6 = arith.constant 5.000000e-01 : f32
    %9 = vector.broadcast %cst_6 : f32 to vector<16x128xf32>
    %10 = arith.mulf %9, %8 : vector<16x128xf32>
    %cst_7 = arith.constant 0.707106769 : f32
    %11 = vector.broadcast %cst_7 : f32 to vector<16x128xf32>
    %12 = arith.mulf %8, %11 : vector<16x128xf32>
    %13 = math.erf %12 : vector<16x128xf32>
    %cst_8 = arith.constant 1.000000e+00 : f32
    %14 = vector.broadcast %cst_8 : f32 to vector<16x128xf32>
    %15 = arith.addf %14, %13 : vector<16x128xf32>
    %16 = arith.mulf %10, %15 : vector<16x128xf32>
    %c0_9 = arith.constant 0 : index
    %c0_10 = arith.constant 0 : index
    %17 = vector.load %arg10[%c0_9, %c0_10] : memref<16x64xf32, #tpu.memory_space<vmem>>, vector<16x64xf32>
    %c0_11 = arith.constant 0 : index
    %c0_12 = arith.constant 0 : index
    %18 = vector.load %arg5[%c0_11, %c0_12] : memref<128x64xf32, #tpu.memory_space<vmem>>, vector<128x64xf32>
    %cst_13 = arith.constant dense<0.000000e+00> : vector<16x64xf32>
    %19 = tpu.matmul %16, %18, %cst_13 {dimension_numbers = #tpu.dot_dimension_numbers<[1], [0], [0], [1], [0, 0, 1, 1], [], []>} : vector<16x128xf32>, vector<128x64xf32>, vector<16x64xf32> -> vector<16x64xf32>
    %20 = arith.addf %17, %19 : vector<16x64xf32>
    %c0_14 = arith.constant 0 : index
    %c0_15 = arith.constant 0 : index
    %21 = vector.load %arg10[%c0_14, %c0_15] : memref<16x64xf32, #tpu.memory_space<vmem>>, vector<16x64xf32>
    tpu.vector_store %arg10[%c0_14, %c0_15], %20 {strides = array<i32>} : memref<16x64xf32, #tpu.memory_space<vmem>>, vector<16x64xf32>,
    %c0_i32_16 = arith.constant 0 : i32
    %22 = arith.cmpi eq, %arg1, %c0_i32_16 : i32
    %23 = arith.extui %22 : i1 to i32
    %c0_i32_17 = arith.constant 0 : i32
    %24 = arith.cmpi ne, %23, %c0_i32_17 : i32
    scf.if %24 {
      %c0_18 = arith.constant 0 : index
      %c0_19 = arith.constant 0 : index
      %25 = vector.load %arg10[%c0_18, %c0_19] : memref<16x64xf32, #tpu.memory_space<vmem>>, vector<16x64xf32>
      %c0_20 = arith.constant 0 : index
      %c0_21 = arith.constant 0 : index
      %26 = vector.load %arg6[%c0_20, %c0_21] : memref<1x64xf32, #tpu.memory_space<vmem>>, vector<1x64xf32>
      %27 = vector.broadcast %26 : vector<1x64xf32> to vector<16x64xf32>
      %28 = arith.addf %25, %27 : vector<16x64xf32>
      %cst_22 = arith.constant 5.000000e-01 : f32
      %29 = vector.broadcast %cst_22 : f32 to vector<16x64xf32>
      %30 = arith.mulf %29, %28 : vector<16x64xf32>
      %cst_23 = arith.constant 0.707106769 : f32
      %31 = vector.broadcast %cst_23 : f32 to vector<16x64xf32>
      %32 = arith.mulf %28, %31 : vector<16x64xf32>
      %33 = math.erf %32 : vector<16x64xf32>
      %cst_24 = arith.constant 1.000000e+00 : f32
      %34 = vector.broadcast %cst_24 : f32 to vector<16x64xf32>
      %35 = arith.addf %34, %33 : vector<16x64xf32>
      %36 = arith.mulf %30, %35 : vector<16x64xf32>
      %c0_25 = arith.constant 0 : index
      %c0_26 = arith.constant 0 : index
      %37 = vector.load %arg7[%c0_25, %c0_26] : memref<64x64xf32, #tpu.memory_space<vmem>>, vector<64x64xf32>
      %cst_27 = arith.constant dense<0.000000e+00> : vector<16x64xf32>
      %38 = tpu.matmul %36, %37, %cst_27 {dimension_numbers = #tpu.dot_dimension_numbers<[1], [0], [0], [1], [0, 0, 1, 1], [], []>} : vector<16x64xf32>, vector<64x64xf32>, vector<16x64xf32> -> vector<16x64xf32>
      %c0_28 = arith.constant 0 : index
      %c0_29 = arith.constant 0 : index
      %39 = vector.load %arg8[%c0_28, %c0_29] : memref<1x64xf32, #tpu.memory_space<vmem>>, vector<1x64xf32>
      %40 = vector.broadcast %39 : vector<1x64xf32> to vector<16x64xf32>
      %41 = arith.addf %38, %40 : vector<16x64xf32>
      %c0_30 = arith.constant 0 : index
      %c0_31 = arith.constant 0 : index
      %42 = vector.load %arg9[%c0_30, %c0_31] : memref<16x64xf32, #tpu.memory_space<vmem>>, vector<16x64xf32>
      tpu.vector_store %arg9[%c0_30, %c0_31], %41 {strides = array<i32>} : memref<16x64xf32, #tpu.memory_space<vmem>>, vector<16x64xf32>,
    } else {
    }
    return
  }
  func.func @transform_0(%arg0: i32, %arg1: i32) -> (i32, i32) {
    %c0_i32 = arith.constant 0 : i32
    %c0_i32_0 = arith.constant 0 : i32
    return %arg0, %c0_i32 : i32, i32
  }
  func.func @transform_1(%arg0: i32, %arg1: i32) -> (i32, i32) {
    %c0_i32 = arith.constant 0 : i32
    %c0_i32_0 = arith.constant 0 : i32
    return %c0_i32, %arg1 : i32, i32
  }
  func.func @transform_2(%arg0: i32, %arg1: i32) -> (i32, i32) {
    %c0_i32 = arith.constant 0 : i32
    %c0_i32_0 = arith.constant 0 : i32
    return %c0_i32, %arg1 : i32, i32
  }
  func.func @transform_3(%arg0: i32, %arg1: i32) -> (i32, i32) {
    %c0_i32 = arith.constant 0 : i32
    %c0_i32_0 = arith.constant 0 : i32
    return %arg1, %c0_i32 : i32, i32
  }
  func.func @transform_4(%arg0: i32, %arg1: i32) -> (i32, i32) {
    %c0_i32 = arith.constant 0 : i32
    %c0_i32_0 = arith.constant 0 : i32
    %c0_i32_1 = arith.constant 0 : i32
    return %c0_i32, %c0_i32_0 : i32, i32
  }
  func.func @transform_5(%arg0: i32, %arg1: i32) -> (i32, i32) {
    %c0_i32 = arith.constant 0 : i32
    %c0_i32_0 = arith.constant 0 : i32
    %c0_i32_1 = arith.constant 0 : i32
    return %c0_i32, %c0_i32_0 : i32, i32
  }
  func.func @transform_6(%arg0: i32, %arg1: i32) -> (i32, i32) {
    %c0_i32 = arith.constant 0 : i32
    %c0_i32_0 = arith.constant 0 : i32
    %c0_i32_1 = arith.constant 0 : i32
    return %c0_i32, %c0_i32_0 : i32, i32
  }
  func.func @transform_7(%arg0: i32, %arg1: i32) -> (i32, i32) {
    %c0_i32 = arith.constant 0 : i32
    %c0_i32_0 = arith.constant 0 : i32
    return %arg0, %c0_i32 : i32, i32
  }
}

</mosaic_0001>

<llo_original>
// kernel: tpu_custom_call.1
$region0: #{tpu_custom_call.1}
  #allocation0 [shape = 'u32[]', space=smem, size = 0x4, offset = 0x4, fixed_abs, tag = 'smem constant byte address 0x4 - core index']
  #allocation1 [shape = 'u32[144,128]{1,0:T(1,128)}', space=vmem, size = 0x12000, scoped, tag = 'internal scratch']
  #allocation2 [shape = 'f32[16,64]{1,0:T(8,128)}', space=vmem, size = 0x2000, scoped, tag = 'scratch operand']
  %s0 = inlined_call_operand.vmem [shape: f32[16,32], index: 0, kind: input, shape index: {}]
  %s1 = inlined_call_operand.vmem [shape: f32[32,128], index: 1, kind: input, shape index: {}]
  %s2 = inlined_call_operand.vmem [shape: f32[1,128], index: 2, kind: input, shape index: {}]
  %s3 = inlined_call_operand.vmem [shape: f32[128,64], index: 3, kind: input, shape index: {}]
  %s4 = inlined_call_operand.vmem [shape: f32[1,64], index: 4, kind: input, shape index: {}]
  %s5 = inlined_call_operand.vmem [shape: f32[64,64], index: 5, kind: input, shape index: {}]
  %s6 = inlined_call_operand.vmem [shape: f32[1,64], index: 6, kind: input, shape index: {}]
  %s7 = inlined_call_operand.hbm [shape: f32[16,64], index: 7, kind: output, shape index: {}]
  %s8 = sld [smem:[#allocation0]]
  $region46: #{tpu_custom_call.1} parent=0
    _
  %s10 = ssub.s32 1, %s8
  %s11 = scalar_select 0, %s10, %s8
  $region1: #{tpu_custom_call.1} parent=0
    #allocation3 [shape = 'u8[8192]{0}', space=vmem, size = 0x2000, scoped, tag = 'output window, operand 0, single buffered']
    #allocation4 [shape = 's32[1]{0}', space=sflag, size = 0x4, scoped, tag = 'scoped memory for tpu_custom_call.1']
    %12 = vsyncpa [#allocation4], 0
    // Predicated region
    $region2: #{tpu_custom_call.1} parent=1 // pred_check
      _
    $region3: #{tpu_custom_call.1} parent=1 // pred_check_branch
      %14 = sbr.rel (0) target = $region5
    $region4: #{tpu_custom_call.1} parent=1 // pred_region
      _
    $region5: #{tpu_custom_call.1} parent=1 // pred_fallthru
      _
    // Predicated region
    $region6: #{tpu_custom_call.1} parent=1 // pred_check
      _
    $region7: #{tpu_custom_call.1} parent=1 // pred_check_branch
      %16 = sbr.rel (0) target = $region9
    $region8: #{tpu_custom_call.1} parent=1 // pred_region
      _
    $region9: #{tpu_custom_call.1} parent=1 // pred_fallthru
      _
    // Predicated region
    $region10: #{tpu_custom_call.1} parent=1 // pred_check
      _
    $region11: #{tpu_custom_call.1} parent=1 // pred_check_branch
      %18 = sbr.rel (0) target = $region13
    $region12: #{tpu_custom_call.1} parent=1 // pred_region
      _
    $region13: #{tpu_custom_call.1} parent=1 // pred_fallthru
      _
    // Predicated region
    $region14: #{tpu_custom_call.1} parent=1 // pred_check
      _
    $region15: #{tpu_custom_call.1} parent=1 // pred_check_branch
      %20 = sbr.rel (0) target = $region17
    $region16: #{tpu_custom_call.1} parent=1 // pred_region
      _
    $region17: #{tpu_custom_call.1} parent=1 // pred_fallthru
      _
    // Predicated region
    $region18: #{tpu_custom_call.1} parent=1 // pred_check
      _
    $region19: #{tpu_custom_call.1} parent=1 // pred_check_branch
      %22 = sbr.rel (0) target = $region21
    $region20: #{tpu_custom_call.1} parent=1 // pred_region
      _
    $region21: #{tpu_custom_call.1} parent=1 // pred_fallthru
      _
    // Predicated region
    $region22: #{tpu_custom_call.1} parent=1 // pred_check
      _
    $region23: #{tpu_custom_call.1} parent=1 // pred_check_branch
      %24 = sbr.rel (0) target = $region25
    $region24: #{tpu_custom_call.1} parent=1 // pred_region
      _
    $region25: #{tpu_custom_call.1} parent=1 // pred_fallthru
      _
    // Predicated region
    $region26: #{tpu_custom_call.1} parent=1 // pred_check
      _
    $region27: #{tpu_custom_call.1} parent=1 // pred_check_branch
      %26 = sbr.rel (0) target = $region29
    $region28: #{tpu_custom_call.1} parent=1 // pred_region
      _
    $region29: #{tpu_custom_call.1} parent=1 // pred_fallthru
      _
    %p27 = scmp.eq.s32.totalorder 0, 0
    // Predicated region
    $region30: #{tpu_custom_call.1} parent=1 // pred_check
      %p28 = pneg %p27
    $region31: #{tpu_custom_call.1} parent=1 // pred_check_branch
      %30 = sbr.rel (%p28) target = $region33
    $region32: #{tpu_custom_call.1} parent=1 // pred_region
      %vm31 = vcmask 523264
      %32 = vst.msk [vmem:[#allocation2] sm:$0xff] %vm31, 0.0
      %33 = vst.msk [vmem:[#allocation2 + $0x8] sm:$0xff] %vm31, 0.0
    $region33: #{tpu_custom_call.1} parent=1 // pred_fallthru
      _
    %v34 = vld [vmem:[%s0] sm:$0xff]
    %v35 = vld [vmem:[%s0 + $0x8] sm:$0xff]
    %v36 = vld [vmem:[%s1] sm:$0xff]
    %v37 = vld [vmem:[%s1 + $0x8] sm:$0xff]
    %v38 = vld [vmem:[%s1 + $0x10] sm:$0xff]
    %v39 = vld [vmem:[%s1 + $0x18] sm:$0xff]
    %v40 = vld [vmem:[%s2] sm:$0x1]
    %v42 = vlaneseq
    %v43 = vshrl.u32 %v42, 7
    %v44 = vsub.s32 0, %v43
    %v45 = vrot.slane %v40, %v44
    %vm47 = vcmask 261120
    %v49 = vsel %vm47, %v34, 0
    %v52 = vsel %vm47, %v35, 0
    %54 = vmatprep.subr.mxu0 0.0
    %55 = vmatpush1.msra.mxu0 %v36
    %56 = vmatprep.subr.mxu0 0.0
    %57 = vmatpush1.msra.mxu0 %v37
    %58 = vmatprep.subr.mxu0 0.0
    %59 = vmatpush1.msra.mxu0 %v38
    %60 = vmatprep.subr.mxu0 0.0
    %61 = vmatpush1.msra.mxu0 %v39
    %62 = vmatprep.subr.mxu0 0.0
    %63 = vmatpush1.msra.mxu0 0.0
    %64 = vmatprep.subr.mxu0 0.0
    %65 = vmatpush1.msra.mxu0 0.0
    %66 = vmatprep.subr.mxu0 0.0
    %67 = vmatpush1.msra.mxu0 0.0
    %68 = vmatprep.subr.mxu0 0.0
    %69 = vmatpush1.msra.mxu0 0.0
    %70 = vmatprep.subr.mxu0 0.0
    %71 = vmatpush1.msra.mxu0 0.0
    %72 = vmatprep.subr.mxu0 0.0
    %73 = vmatpush1.msra.mxu0 0.0
    %74 = vmatprep.subr.mxu0 0.0
    %75 = vmatpush1.msra.mxu0 0.0
    %76 = vmatprep.subr.mxu0 0.0
    %77 = vmatpush1.msra.mxu0 0.0
    %78 = vmatprep.subr.mxu0 0.0
    %79 = vmatpush1.msra.mxu0 0.0
    %80 = vmatprep.subr.mxu0 0.0
    %81 = vmatpush1.msra.mxu0 0.0
    %82 = vmatprep.subr.mxu0 0.0
    %83 = vmatpush1.msra.mxu0 0.0
    %84 = vmatprep.subr.mxu0 0.0
    %85 = vmatpush1.msra.mxu0 0.0
    %86 = vmatprep.subr.mxu0 0.0
    %87 = vmatpush1.msra.mxu0 0.0
    %88 = vmatprep.subr.mxu0 0.0
    %89 = vmatpush1.msra.mxu0 0.0
    %90 = vmatprep.subr.mxu0 0.0
    %91 = vmatpush1.msra.mxu0 0.0
    %92 = vmatprep.subr.mxu0 0.0
    %93 = vmatpush1.msra.mxu0 0.0
    %94 = vmatprep.subr.mxu0 0.0
    %95 = vmatpush1.msra.mxu0 0.0
    %96 = vmatprep.subr.mxu0 0.0
    %97 = vmatpush1.msra.mxu0 0.0
    %98 = vmatprep.subr.mxu0 0.0
    %99 = vmatpush1.msra.mxu0 0.0
    %100 = vmatprep.subr.mxu0 0.0
    %101 = vmatpush1.msra.mxu0 0.0
    %102 = vmatprep.subr.mxu0 0.0
    %103 = vmatpush1.msra.mxu0 0.0
    %104 = vmatprep.subr.mxu0 0.0
    %105 = vmatpush1.msra.mxu0 0.0
    %106 = vmatprep.subr.mxu0 0.0
    %107 = vmatpush1.msra.mxu0 0.0
    %108 = vmatprep.subr.mxu0 0.0
    %109 = vmatpush1.msra.mxu0 0.0
    %110 = vmatprep.subr.mxu0 0.0
    %111 = vmatpush1.msra.mxu0 0.0
    %112 = vmatprep.subr.mxu0 0.0
    %113 = vmatpush1.msra.mxu0 0.0
    %114 = vmatprep.subr.mxu0 0.0
    %115 = vmatpush1.msra.mxu0 0.0
    %116 = vmatprep.subr.mxu0 0.0
    %117 = vmatpush1.msra.mxu0 0.0
    %118 = vmatprep.mubr.f32.mxu0 0.0
    %119 = vmatmul.mubr.f32.gmra.mrb[0].mxu0 %v49
    %v120 = vpop.f32.mrb[0].mxu0
    %v121 = vadd.f32 %v45, %v120
    %v122 = vpop.f32.mrb[0].mxu0
    %123 = vmatprep.mubr.f32.mxu0 0.0
    %124 = vmatmul.mubr.f32.gmra.mrb[0].mxu0 %v52
    %v125 = vpop.f32.mrb[0].mxu0
    %v126 = vadd.f32 %v45, %v125
    %v127 = vpop.f32.mrb[0].mxu0
    %128 = vdwg.mxu0
    %v129 = vmul.f32 %v121, 0.5
    %v130 = vmul.f32 %v126, 0.5
    %v131 = vmul.f32 %v121, 0.70710677
    %v132 = vmul.f32 %v126, 0.70710677
    %v133 = verf.f32.pop %v131
    %v134 = verf.f32.pop %v132
    %v135 = vadd.f32 %v133, 1.0
    %v136 = vadd.f32 %v134, 1.0
    %v137 = vmul.f32 %v129, %v135
    %v138 = vmul.f32 %v130, %v136
    %v139 = vld [vmem:[#allocation2] sm:$0xff]
    %v140 = vld [vmem:[#allocation2 + $0x8] sm:$0xff]
    %v141 = vld [vmem:[%s3] sm:$0xff]
    %v142 = vld [vmem:[%s3 + $0x8] sm:$0xff]
    %v143 = vld [vmem:[%s3 + $0x10] sm:$0xff]
    %v144 = vld [vmem:[%s3 + $0x18] sm:$0xff]
    %v145 = vld [vmem:[%s3 + $0x20] sm:$0xff]
    %v146 = vld [vmem:[%s3 + $0x28] sm:$0xff]
    %v147 = vld [vmem:[%s3 + $0x30] sm:$0xff]
    %v148 = vld [vmem:[%s3 + $0x38] sm:$0xff]
    %v149 = vld [vmem:[%s3 + $0x40] sm:$0xff]
    %v150 = vld [vmem:[%s3 + $0x48] sm:$0xff]
    %v151 = vld [vmem:[%s3 + $0x50] sm:$0xff]
    %v152 = vld [vmem:[%s3 + $0x58] sm:$0xff]
    %v153 = vld [vmem:[%s3 + $0x60] sm:$0xff]
    %v154 = vld [vmem:[%s3 + $0x68] sm:$0xff]
    %v155 = vld [vmem:[%s3 + $0x70] sm:$0xff]
    %v156 = vld [vmem:[%s3 + $0x78] sm:$0xff]
    %157 = vmatprep.subr.mxu0 0.0
    %158 = vmatpush1.msra.mxu0 %v141
    %159 = vmatprep.subr.mxu0 0.0
    %160 = vmatpush1.msra.mxu0 %v142
    %161 = vmatprep.subr.mxu0 0.0
    %162 = vmatpush1.msra.mxu0 %v143
    %163 = vmatprep.subr.mxu0 0.0
    %164 = vmatpush1.msra.mxu0 %v144
    %165 = vmatprep.subr.mxu0 0.0
    %166 = vmatpush1.msra.mxu0 %v145
    %167 = vmatprep.subr.mxu0 0.0
    %168 = vmatpush1.msra.mxu0 %v146
    %169 = vmatprep.subr.mxu0 0.0
    %170 = vmatpush1.msra.mxu0 %v147
    %171 = vmatprep.subr.mxu0 0.0
    %172 = vmatpush1.msra.mxu0 %v148
    %173 = vmatprep.subr.mxu0 0.0
    %174 = vmatpush1.msra.mxu0 %v149
    %175 = vmatprep.subr.mxu0 0.0
    %176 = vmatpush1.msra.mxu0 %v150
    %177 = vmatprep.subr.mxu0 0.0
    %178 = vmatpush1.msra.mxu0 %v151
    %179 = vmatprep.subr.mxu0 0.0
    %180 = vmatpush1.msra.mxu0 %v152
    %181 = vmatprep.subr.mxu0 0.0
    %182 = vmatpush1.msra.mxu0 %v153
    %183 = vmatprep.subr.mxu0 0.0
    %184 = vmatpush1.msra.mxu0 %v154
    %185 = vmatprep.subr.mxu0 0.0
    %186 = vmatpush1.msra.mxu0 %v155
    %187 = vmatprep.subr.mxu0 0.0
    %188 = vmatpush1.msra.mxu0 %v156
    %189 = vmatprep.subr.mxu0 0.0
    %190 = vmatpush1.msra.mxu0 0.0
    %191 = vmatprep.subr.mxu0 0.0
    %192 = vmatpush1.msra.mxu0 0.0
    %193 = vmatprep.subr.mxu0 0.0
    %194 = vmatpush1.msra.mxu0 0.0
    %195 = vmatprep.subr.mxu0 0.0
    %196 = vmatpush1.msra.mxu0 0.0
    %197 = vmatprep.subr.mxu0 0.0
    %198 = vmatpush1.msra.mxu0 0.0
    %199 = vmatprep.subr.mxu0 0.0
    %200 = vmatpush1.msra.mxu0 0.0
    %201 = vmatprep.subr.mxu0 0.0
    %202 = vmatpush1.msra.mxu0 0.0
    %203 = vmatprep.subr.mxu0 0.0
    %204 = vmatpush1.msra.mxu0 0.0
    %205 = vmatprep.subr.mxu0 0.0
    %206 = vmatpush1.msra.mxu0 0.0
    %207 = vmatprep.subr.mxu0 0.0
    %208 = vmatpush1.msra.mxu0 0.0
    %209 = vmatprep.subr.mxu0 0.0
    %210 = vmatpush1.msra.mxu0 0.0
    %211 = vmatprep.subr.mxu0 0.0
    %212 = vmatpush1.msra.mxu0 0.0
    %213 = vmatprep.subr.mxu0 0.0
    %214 = vmatpush1.msra.mxu0 0.0
    %215 = vmatprep.subr.mxu0 0.0
    %216 = vmatpush1.msra.mxu0 0.0
    %217 = vmatprep.subr.mxu0 0.0
    %218 = vmatpush1.msra.mxu0 0.0
    %219 = vmatprep.subr.mxu0 0.0
    %220 = vmatpush1.msra.mxu0 0.0
    %221 = vmatprep.mubr.f32.mxu0 0.0
    %222 = vmatmul.mubr.f32.gmra.mrb[0].mxu0 %v137
    %v223 = vpop.f32.mrb[0].mxu0
    %v224 = vadd.f32 0.0, %v223
    %v225 = vpop.f32.mrb[0].mxu0
    %226 = vmatprep.mubr.f32.mxu0 0.0
    %227 = vmatmul.mubr.f32.gmra.mrb[0].mxu0 %v138
    %v228 = vpop.f32.mrb[0].mxu0
    %v229 = vadd.f32 0.0, %v228
    %v230 = vpop.f32.mrb[0].mxu0
    %231 = vdwg.mxu0
    %v232 = vadd.f32 %v139, %v224
    %v233 = vadd.f32 %v140, %v229
    %vm234 = vcmask 523264
    %235 = vst.msk [vmem:[#allocation2] sm:$0xff] %vm234, %v232
    %236 = vst.msk [vmem:[#allocation2 + $0x8] sm:$0xff] %vm234, %v233
    // Predicated region
    $region34: #{tpu_custom_call.1} parent=1 // pred_check
      %p237 = pneg %p27
    $region35: #{tpu_custom_call.1} parent=1 // pred_check_branch
      %239 = sbr.rel (%p237) target = $region37
    $region36: #{tpu_custom_call.1} parent=1 // pred_region
      %v240 = vld [vmem:[#allocation2] sm:$0xff]
      %v241 = vld [vmem:[#allocation2 + $0x8] sm:$0xff]
      %v242 = vld [vmem:[%s4] sm:$0x1]
      %v244 = vlaneseq
      %v245 = vshrl.u32 %v244, 7
      %v246 = vsub.s32 0, %v245
      %v247 = vrot.slane %v242, %v246
      %v249 = vadd.f32 %v240, %v247
      %v250 = vadd.f32 %v241, %v247
      %v251 = vmul.f32 %v249, 0.5
      %v252 = vmul.f32 %v250, 0.5
      %v253 = vmul.f32 %v249, 0.70710677
      %v254 = vmul.f32 %v250, 0.70710677
      %v255 = verf.f32.pop %v253
      %v256 = verf.f32.pop %v254
      %v257 = vadd.f32 %v255, 1.0
      %v258 = vadd.f32 %v256, 1.0
      %v259 = vmul.f32 %v251, %v257
      %v260 = vmul.f32 %v252, %v258
      %v261 = vld [vmem:[%s5] sm:$0xff]
      %v262 = vld [vmem:[%s5 + $0x8] sm:$0xff]
      %v263 = vld [vmem:[%s5 + $0x10] sm:$0xff]
      %v264 = vld [vmem:[%s5 + $0x18] sm:$0xff]
      %v265 = vld [vmem:[%s5 + $0x20] sm:$0xff]
      %v266 = vld [vmem:[%s5 + $0x28] sm:$0xff]
      %v267 = vld [vmem:[%s5 + $0x30] sm:$0xff]
      %v268 = vld [vmem:[%s5 + $0x38] sm:$0xff]
      %v269 = vld [vmem:[%s6] sm:$0x1]
      %v271 = vlaneseq
      %v272 = vshrl.u32 %v271, 7
      %v273 = vsub.s32 0, %v272
      %v274 = vrot.slane %v269, %v273
      %v277 = vsel %vm234, %v259, 0
      %v280 = vsel %vm234, %v260, 0
      %282 = vmatprep.subr.mxu0 0.0
      %283 = vmatpush1.msra.mxu0 %v261
      %284 = vmatprep.subr.mxu0 0.0
      %285 = vmatpush1.msra.mxu0 %v262
      %286 = vmatprep.subr.mxu0 0.0
      %287 = vmatpush1.msra.mxu0 %v263
      %288 = vmatprep.subr.mxu0 0.0
      %289 = vmatpush1.msra.mxu0 %v264
      %290 = vmatprep.subr.mxu0 0.0
      %291 = vmatpush1.msra.mxu0 %v265
      %292 = vmatprep.subr.mxu0 0.0
      %293 = vmatpush1.msra.mxu0 %v266
      %294 = vmatprep.subr.mxu0 0.0
      %295 = vmatpush1.msra.mxu0 %v267
      %296 = vmatprep.subr.mxu0 0.0
      %297 = vmatpush1.msra.mxu0 %v268
      %298 = vmatprep.subr.mxu0 0.0
      %299 = vmatpush1.msra.mxu0 0.0
      %300 = vmatprep.subr.mxu0 0.0
      %301 = vmatpush1.msra.mxu0 0.0
      %302 = vmatprep.subr.mxu0 0.0
      %303 = vmatpush1.msra.mxu0 0.0
      %304 = vmatprep.subr.mxu0 0.0
      %305 = vmatpush1.msra.mxu0 0.0
      %306 = vmatprep.subr.mxu0 0.0
      %307 = vmatpush1.msra.mxu0 0.0
      %308 = vmatprep.subr.mxu0 0.0
      %309 = vmatpush1.msra.mxu0 0.0
      %310 = vmatprep.subr.mxu0 0.0
      %311 = vmatpush1.msra.mxu0 0.0
      %312 = vmatprep.subr.mxu0 0.0
      %313 = vmatpush1.msra.mxu0 0.0
      %314 = vmatprep.subr.mxu0 0.0
      %315 = vmatpush1.msra.mxu0 0.0
      %316 = vmatprep.subr.mxu0 0.0
      %317 = vmatpush1.msra.mxu0 0.0
      %318 = vmatprep.subr.mxu0 0.0
      %319 = vmatpush1.msra.mxu0 0.0
      %320 = vmatprep.subr.mxu0 0.0
      %321 = vmatpush1.msra.mxu0 0.0
      %322 = vmatprep.subr.mxu0 0.0
      %323 = vmatpush1.msra.mxu0 0.0
      %324 = vmatprep.subr.mxu0 0.0
      %325 = vmatpush1.msra.mxu0 0.0
      %326 = vmatprep.subr.mxu0 0.0
      %327 = vmatpush1.msra.mxu0 0.0
      %328 = vmatprep.subr.mxu0 0.0
      %329 = vmatpush1.msra.mxu0 0.0
      %330 = vmatprep.subr.mxu0 0.0
      %331 = vmatpush1.msra.mxu0 0.0
      %332 = vmatprep.subr.mxu0 0.0
      %333 = vmatpush1.msra.mxu0 0.0
      %334 = vmatprep.subr.mxu0 0.0
      %335 = vmatpush1.msra.mxu0 0.0
      %336 = vmatprep.subr.mxu0 0.0
      %337 = vmatpush1.msra.mxu0 0.0
      %338 = vmatprep.subr.mxu0 0.0
      %339 = vmatpush1.msra.mxu0 0.0
      %340 = vmatprep.subr.mxu0 0.0
      %341 = vmatpush1.msra.mxu0 0.0
      %342 = vmatprep.subr.mxu0 0.0
      %343 = vmatpush1.msra.mxu0 0.0
      %344 = vmatprep.subr.mxu0 0.0
      %345 = vmatpush1.msra.mxu0 0.0
      %346 = vmatprep.mubr.f32.mxu0 0.0
      %347 = vmatmul.mubr.f32.gmra.mrb[0].mxu0 %v277
      %v348 = vpop.f32.mrb[0].mxu0
      %v349 = vadd.f32 %v274, %v348
      %v350 = vpop.f32.mrb[0].mxu0
      %351 = vmatprep.mubr.f32.mxu0 0.0
      %352 = vmatmul.mubr.f32.gmra.mrb[0].mxu0 %v280
      %v353 = vpop.f32.mrb[0].mxu0
      %v354 = vadd.f32 %v274, %v353
      %v355 = vpop.f32.mrb[0].mxu0
      %356 = vdwg.mxu0
      %357 = vst.msk [vmem:[#allocation3] sm:$0xff] %vm234, %v349
      %358 = vst.msk [vmem:[#allocation3 + $0x8] sm:$0xff] %vm234, %v354
    $region37: #{tpu_custom_call.1} parent=1 // pred_fallthru
      _
    // Predicated region
    $region38: #{tpu_custom_call.1} parent=1 // pred_check
      _
    $region39: #{tpu_custom_call.1} parent=1 // pred_check_branch
      %360 = sbr.rel (0) target = $region41
    $region40: #{tpu_custom_call.1} parent=1 // pred_region
      %s362 = ssub.s32 256, 256
      %363 = vsyncadd [#allocation4], %s362
      %s364 = sshll.u32 [#allocation3], 4
      %s365 = int_to_ptr.vmem [resolvable:$true] %s364
      %370 = dma.vmem_to_hbm [thread:$0]  %s365, 256, %s7, [#allocation4], 128, 128, 8
    $region41: #{tpu_custom_call.1} parent=1 // pred_fallthru
      _
    // Predicated region
    $region42: #{tpu_custom_call.1} parent=1 // pred_check
      _
    $region43: #{tpu_custom_call.1} parent=1 // pred_check_branch
      %372 = sbr.rel (0) target = $region45
    $region44: #{tpu_custom_call.1} parent=1 // pred_region
      %373 = dma.done [#allocation4], 256
    $region45: #{tpu_custom_call.1} parent=1 // pred_fallthru
      _
    %374 = vsyncpa [#allocation4], 1

</llo_original>
